<compile_context>
chip_gen: v5e
topology: v5e:2x2
jax: 0.10.0
libtpu: 0.0.40
codegen_flags: <defaults>
</compile_context>

<pallas_src>
import functools

import jax
import jax.numpy as jnp
from jax.experimental import pallas as pl
from jax.experimental.pallas import tpu as pltpu

_LANE = 128
_SUBLANE = 8
_SMALL_ELEMS = 512 * 1024          # <= 2 MiB f32 -> single full-array block


def _sourcegen_kernel(prob_ref, out_ref, *, scale, bipolar):
    # Native-dtype load, f32 compute (matches the torch float reference),
    # rtype store: dtype conversion never makes a separate HBM pass.
    p = prob_ref[...].astype(jnp.float32)
    if bipolar:
        # Keep the exact op order of the torch reference so pre-round values
        # (and therefore half-to-even ties) match bit-for-bit.
        v = (p + 1.0) * 0.5 * scale
    else:
        v = p * scale
    out_ref[...] = jnp.round(v).astype(out_ref.dtype)


def _round_down(x, m):
    return (x // m) * m


def _select_tile_bytes():
    """Generation-aware block byte budget + optional scoped-VMEM override."""
    kind = ""
    try:
        kind = jax.devices()[0].device_kind.lower()
    except Exception:
        pass
    if "v7" in kind or "7x" in kind:
        # ~3.2 TB/s per TC: 8 MiB blocks keep per-step overhead <5%.
        # 4 buffers x 8 MiB = 32 MiB -> raise scoped VMEM (64 MiB physical).
        return 8 << 20, 40 << 20
    if "v6" in kind:
        # ~1.4 TB/s: 4 MiB blocks (16 MiB double-buffered) fit the 32 MiB
        # default scoped VMEM with headroom.
        return 4 << 20, None
    # v5e and unknown chips: stay under the 16 MiB default scoped VMEM.
    return 2 << 20, None


def _tiled_call(x2d, kernel, rtype):
    """Stream a 2-D slab through the kernel in generation-sized blocks."""
    rows, cols = x2d.shape
    tile_bytes, vmem_limit = _select_tile_bytes()
    bpe = max(x2d.dtype.itemsize, jnp.dtype(rtype).itemsize)

    # Column tile: whole-row stripes when they fit, else a 128-multiple slice.
    if cols * _SUBLANE * bpe <= tile_bytes:
        tc = cols
    else:
        tc = max(_LANE, _round_down(tile_bytes // (_SUBLANE * bpe), _LANE))
    # Row tile: as many 8-row stripes as fit in the byte budget.
    tr = max(_SUBLANE, _round_down(tile_bytes // (tc * bpe), _SUBLANE))
    if tr >= rows:
        tr = rows                      # full-dim block: exempt from 8-div rule
    if tc >= cols:
        tc = cols

    cp = dict(dimension_semantics=("parallel", "parallel"))
    if vmem_limit is not None:
        cp["vmem_limit_bytes"] = vmem_limit
    # TODO(synk): on v7x, verify in a trace that the grid shards across both
    # TensorCores; if it does not, switch the row axis to pltpu.CORE_PARALLEL.
    return pl.pallas_call(
        kernel,
        out_shape=jax.ShapeDtypeStruct((rows, cols), rtype),
        grid=(pl.cdiv(rows, tr), pl.cdiv(cols, tc)),
        in_specs=[pl.BlockSpec((tr, tc), lambda i, j: (i, j))],
        out_specs=pl.BlockSpec((tr, tc), lambda i, j: (i, j)),
        compiler_params=pltpu.CompilerParams(**cp),
    )(x2d)


def source_gen(prob, bitwidth=8, mode="bipolar", rtype=jnp.float32):
    """Pallas equivalent of SourceGen.__init__ quantization + forward()."""
    if mode not in ("unipolar", "bipolar"):
        raise ValueError("SourceGen mode is not implemented.")

    orig_shape = prob.shape
    scale = float(2 ** bitwidth)
    kernel = functools.partial(
        _sourcegen_kernel, scale=scale, bipolar=(mode == "bipolar"))

    n = prob.size
    if n == 0:
        return jnp.zeros(orig_shape, dtype=rtype)

    # --- Small path: one full-array VMEM block over the original shape. ---
    if n <= _SMALL_ELEMS:
        x = prob if prob.ndim >= 2 else prob.reshape(1, -1)
        out = pl.pallas_call(
            kernel,
            out_shape=jax.ShapeDtypeStruct(x.shape, rtype),
            in_specs=[pl.BlockSpec(memory_space=pltpu.MemorySpace.VMEM)],
            out_specs=pl.BlockSpec(memory_space=pltpu.MemorySpace.VMEM),
        )(x)
        return out.reshape(orig_shape)

    # --- Large path: pure HBM-bandwidth-bound streaming over 2-D tiles. ---
    if (prob.ndim >= 2
            and orig_shape[-1] % _LANE == 0
            and orig_shape[-2] % _SUBLANE == 0):
        # Trailing dims already (8,128)-aligned: collapsing only the leading
        # dims is a layout-preserving reshape — no HBM relayout pass.
        cols = orig_shape[-1]
        out2d = _tiled_call(prob.reshape(n // cols, cols), kernel, rtype)
        return out2d.reshape(orig_shape)

    # Fallback: Pallas over the 128-aligned bulk (wide lane dim) and plain jnp
    # for the <128-element tail — avoids padding/copying the whole array.
    flat = prob.reshape(-1)
    n_tail = n % _LANE
    n_bulk = n - n_tail
    lane = 1024
    while n_bulk % lane:
        lane //= 2                     # terminates at 128 (n_bulk % 128 == 0)
    out_flat = _tiled_call(
        flat[:n_bulk].reshape(n_bulk // lane, lane), kernel, rtype
    ).reshape(-1)
    if n_tail:
        t = flat[n_bulk:].astype(jnp.float32)
        tv = (t + 1.0) * 0.5 * scale if mode == "bipolar" else t * scale
        out_flat = jnp.concatenate([out_flat, jnp.round(tv).astype(rtype)])
    return out_flat.reshape(orig_shape)


class SourceGenPallas:
    """Mirror of the PyTorch module: precompute `binary` once, forward returns it."""

    # TODO(synk): torch.nn.Parameter registration / .data mutation has no
    # Pallas equivalent; the quantized tensor is stored as a plain attribute.
    def __init__(self, prob, bitwidth=8, mode="bipolar", rtype=jnp.float32):
        self.prob = prob
        self.mode = mode
        self.rtype = rtype
        self.len = pow(2, bitwidth)
        self.binary = source_gen(prob, bitwidth=bitwidth, mode=mode, rtype=rtype)

    def __call__(self):
        return self.binary


def _ref(prob, bitwidth, mode):
    scale = float(2 ** bitwidth)
    p = prob.astype(jnp.float32)
    if mode == "bipolar":
        return jnp.round((p + 1.0) * 0.5 * scale)
    return jnp.round(p * scale)


if __name__ == "__main__":
    key = jax.random.PRNGKey(0)
    k0, k1, k2, k3, k4 = jax.random.split(key, 5)

    # Primary case: the module's shipped shape, bipolar probabilities in [-1, 1].
    prob = jax.random.uniform(
        k0, (2, 4, 16, 16), dtype=jnp.float32, minval=-1.0, maxval=1.0
    )
    module = SourceGenPallas(prob, bitwidth=8, mode="bipolar", rtype=jnp.float32)
    out = jax.block_until_ready(module())
    assert out.shape == prob.shape and out.dtype == jnp.float32
    assert bool(jnp.all(out == _ref(prob, 8, "bipolar")))

    # Unipolar branch (probabilities in [0, 1]), small single-block path.
    prob_u = jax.random.uniform(k1, (2, 4, 16, 16), dtype=jnp.float32)
    out_u = jax.block_until_ready(source_gen(prob_u, bitwidth=8, mode="unipolar"))
    assert bool(jnp.all(out_u == _ref(prob_u, 8, "unipolar")))

    # 1-D input, small path (reshaped to 2-D inside the wrapper only).
    prob_1d = jax.random.uniform(
        k2, (1000,), dtype=jnp.float32, minval=-1.0, maxval=1.0
    )
    out_1d = jax.block_until_ready(source_gen(prob_1d, bitwidth=8, mode="bipolar"))
    assert bool(jnp.all(out_1d == _ref(prob_1d, 8, "bipolar")))

    # Tiled path, layout-friendly trailing dims (no wrapper relayout).
    prob_t = jax.random.uniform(
        k3, (4, 8, 72, 256), dtype=jnp.float32, minval=-1.0, maxval=1.0
    )
    out_t = jax.block_until_ready(source_gen(prob_t, bitwidth=8, mode="bipolar"))
    assert bool(jnp.all(out_t == _ref(prob_t, 8, "bipolar")))

    # Tiled path, unaligned trailing dims: 128-aligned bulk + jnp tail.
    prob_r = jax.random.uniform(
        k4, (5, 7, 41, 413), dtype=jnp.float32, minval=-1.0, maxval=1.0
    )
    out_r = jax.block_until_ready(source_gen(prob_r, bitwidth=8, mode="bipolar"))
    assert bool(jnp.all(out_r == _ref(prob_r, 8, "bipolar")))

    print("KERNEL_OK")
</pallas_src>

<mosaic_0001>
module attributes {stable_mosaic.version = 11 : i64} {
  func.func @_sourcegen_kernel(%arg0: memref<2x4x16x16xf32, #tpu.memory_space<vmem>>, %arg1: memref<2x4x16x16xf32, #tpu.memory_space<vmem>>) attributes {dimension_semantics = [], scalar_prefetch = 0 : i64, scratch_operands = 0 : i64, tpu.core_type = #tpu.core_type<tc>} {
    %c0 = arith.constant 0 : index
    %c0_0 = arith.constant 0 : index
    %c0_1 = arith.constant 0 : index
    %c0_2 = arith.constant 0 : index
    %0 = vector.load %arg0[%c0, %c0_0, %c0_1, %c0_2] : memref<2x4x16x16xf32, #tpu.memory_space<vmem>>, vector<2x4x16x16xf32>
    %cst = arith.constant 1.000000e+00 : f32
    %1 = vector.broadcast %cst : f32 to vector<2x4x16x16xf32>
    %2 = arith.addf %0, %1 : vector<2x4x16x16xf32>
    %cst_3 = arith.constant 5.000000e-01 : f32
    %3 = vector.broadcast %cst_3 : f32 to vector<2x4x16x16xf32>
    %4 = arith.mulf %2, %3 : vector<2x4x16x16xf32>
    %cst_4 = arith.constant 2.560000e+02 : f32
    %5 = vector.broadcast %cst_4 : f32 to vector<2x4x16x16xf32>
    %6 = arith.mulf %4, %5 : vector<2x4x16x16xf32>
    %7 = math.roundeven %6 : vector<2x4x16x16xf32>
    %c0_5 = arith.constant 0 : index
    %c0_6 = arith.constant 0 : index
    %c0_7 = arith.constant 0 : index
    %c0_8 = arith.constant 0 : index
    %8 = vector.load %arg1[%c0_5, %c0_6, %c0_7, %c0_8] : memref<2x4x16x16xf32, #tpu.memory_space<vmem>>, vector<2x4x16x16xf32>
    tpu.vector_store %arg1[%c0_5, %c0_6, %c0_7, %c0_8], %7 {strides = array<i32>} : memref<2x4x16x16xf32, #tpu.memory_space<vmem>>, vector<2x4x16x16xf32>,
    return
  }
}

</mosaic_0001>

<llo_original>
// kernel: tpu_custom_call.1
$region0: #{tpu_custom_call.1}
  #allocation0 [shape = 'u32[]', space=smem, size = 0x4, offset = 0x4, fixed_abs, tag = 'smem constant byte address 0x4 - core index']
  #allocation1 [shape = 'u32[72,128]{1,0:T(1,128)}', space=vmem, size = 0x9000, scoped, tag = 'internal scratch']
  %s0 = inlined_call_operand.hbm [shape: f32[2,4,16,16], index: 0, kind: input, shape index: {}]
  %s1 = inlined_call_operand.hbm [shape: f32[2,4,16,16], index: 1, kind: output, shape index: {}]
  %s2 = sld [smem:[#allocation0]]
  $region18: #{tpu_custom_call.1} parent=0
    _
  %s4 = ssub.s32 1, %s2
  %s5 = scalar_select 0, %s4, %s2
  $region1: #{tpu_custom_call.1} parent=0
    #allocation2 [shape = 'u8[65536]{0}', space=vmem, size = 0x10000, scoped, tag = 'input window, operand 0, single buffered']
    #allocation3 [shape = 's32[1]{0}', space=sflag, size = 0x4, scoped, tag = 'scoped memory for tpu_custom_call.1']
    #allocation4 [shape = 's32[1]{0}', space=sflag, size = 0x4, scoped, tag = 'scoped memory for tpu_custom_call.1']
    #allocation5 [shape = 'u8[65536]{0}', space=vmem, size = 0x10000, scoped, tag = 'output window, operand 0, single buffered']
    %6 = vsyncpa [#allocation3], 0
    %7 = vsyncpa [#allocation4], 0
    // Predicated region
    $region2: #{tpu_custom_call.1} parent=1 // pred_check
      _
    $region3: #{tpu_custom_call.1} parent=1 // pred_check_branch
      %9 = sbr.rel (0) target = $region5
    $region4: #{tpu_custom_call.1} parent=1 // pred_region
      %11 = vsyncadd [#allocation3], 0
      %s12 = sshll.u32 %s0, 4
      %s13 = int_to_ptr.hbm [resolvable:$true] %s12
      %s14 = sshll.u32 [#allocation2], 4
      %s15 = int_to_ptr.vmem [resolvable:$true] %s14
      %20 = dma.hbm_to_vmem [thread:$0]  %s13, 2048, %s15, [#allocation3], 128, 128, 8
    $region5: #{tpu_custom_call.1} parent=1 // pred_fallthru
      _
    // Predicated region
    $region6: #{tpu_custom_call.1} parent=1 // pred_check
      _
    $region7: #{tpu_custom_call.1} parent=1 // pred_check_branch
      %22 = sbr.rel (0) target = $region9
    $region8: #{tpu_custom_call.1} parent=1 // pred_region
      %24 = dma.done [#allocation3], 2048
    $region9: #{tpu_custom_call.1} parent=1 // pred_fallthru
      _
    %v25 = vld [vmem:[#allocation2] sm:$0xff]
    %v26 = vld [vmem:[#allocation2 + $0x8] sm:$0xff]
    %v27 = vld [vmem:[#allocation2 + $0x10] sm:$0xff]
    %v28 = vld [vmem:[#allocation2 + $0x18] sm:$0xff]
    %v29 = vld [vmem:[#allocation2 + $0x20] sm:$0xff]
    %v30 = vld [vmem:[#allocation2 + $0x28] sm:$0xff]
    %v31 = vld [vmem:[#allocation2 + $0x30] sm:$0xff]
    %v32 = vld [vmem:[#allocation2 + $0x38] sm:$0xff]
    %v33 = vld [vmem:[#allocation2 + $0x40] sm:$0xff]
    %v34 = vld [vmem:[#allocation2 + $0x48] sm:$0xff]
    %v35 = vld [vmem:[#allocation2 + $0x50] sm:$0xff]
    %v36 = vld [vmem:[#allocation2 + $0x58] sm:$0xff]
    %v37 = vld [vmem:[#allocation2 + $0x60] sm:$0xff]
    %v38 = vld [vmem:[#allocation2 + $0x68] sm:$0xff]
    %v39 = vld [vmem:[#allocation2 + $0x70] sm:$0xff]
    %v40 = vld [vmem:[#allocation2 + $0x78] sm:$0xff]
    %v41 = vadd.f32 %v25, 1.0
    %v42 = vadd.f32 %v26, 1.0
    %v43 = vadd.f32 %v27, 1.0
    %v44 = vadd.f32 %v28, 1.0
    %v45 = vadd.f32 %v29, 1.0
    %v46 = vadd.f32 %v30, 1.0
    %v47 = vadd.f32 %v31, 1.0
    %v48 = vadd.f32 %v32, 1.0
    %v49 = vadd.f32 %v33, 1.0
    %v50 = vadd.f32 %v34, 1.0
    %v51 = vadd.f32 %v35, 1.0
    %v52 = vadd.f32 %v36, 1.0
    %v53 = vadd.f32 %v37, 1.0
    %v54 = vadd.f32 %v38, 1.0
    %v55 = vadd.f32 %v39, 1.0
    %v56 = vadd.f32 %v40, 1.0
    %v57 = vmul.f32 %v41, 0.5
    %v58 = vmul.f32 %v42, 0.5
    %v59 = vmul.f32 %v43, 0.5
    %v60 = vmul.f32 %v44, 0.5
    %v61 = vmul.f32 %v45, 0.5
    %v62 = vmul.f32 %v46, 0.5
    %v63 = vmul.f32 %v47, 0.5
    %v64 = vmul.f32 %v48, 0.5
    %v65 = vmul.f32 %v49, 0.5
    %v66 = vmul.f32 %v50, 0.5
    %v67 = vmul.f32 %v51, 0.5
    %v68 = vmul.f32 %v52, 0.5
    %v69 = vmul.f32 %v53, 0.5
    %v70 = vmul.f32 %v54, 0.5
    %v71 = vmul.f32 %v55, 0.5
    %v72 = vmul.f32 %v56, 0.5
    %v73 = vmul.f32 %v57, 256.0
    %v74 = vmul.f32 %v58, 256.0
    %v75 = vmul.f32 %v59, 256.0
    %v76 = vmul.f32 %v60, 256.0
    %v77 = vmul.f32 %v61, 256.0
    %v78 = vmul.f32 %v62, 256.0
    %v79 = vmul.f32 %v63, 256.0
    %v80 = vmul.f32 %v64, 256.0
    %v81 = vmul.f32 %v65, 256.0
    %v82 = vmul.f32 %v66, 256.0
    %v83 = vmul.f32 %v67, 256.0
    %v84 = vmul.f32 %v68, 256.0
    %v85 = vmul.f32 %v69, 256.0
    %v86 = vmul.f32 %v70, 256.0
    %v87 = vmul.f32 %v71, 256.0
    %v88 = vmul.f32 %v72, 256.0
    %v89 = vround.ne.pseudo %v73
    %v90 = vround.ne.pseudo %v74
    %v91 = vround.ne.pseudo %v75
    %v92 = vround.ne.pseudo %v76
    %v93 = vround.ne.pseudo %v77
    %v94 = vround.ne.pseudo %v78
    %v95 = vround.ne.pseudo %v79
    %v96 = vround.ne.pseudo %v80
    %v97 = vround.ne.pseudo %v81
    %v98 = vround.ne.pseudo %v82
    %v99 = vround.ne.pseudo %v83
    %v100 = vround.ne.pseudo %v84
    %v101 = vround.ne.pseudo %v85
    %v102 = vround.ne.pseudo %v86
    %v103 = vround.ne.pseudo %v87
    %v104 = vround.ne.pseudo %v88
    %vm105 = vcmask 130048
    %106 = vst.msk [vmem:[#allocation5] sm:$0xff] %vm105, %v89
    %107 = vst.msk [vmem:[#allocation5 + $0x8] sm:$0xff] %vm105, %v90
    %108 = vst.msk [vmem:[#allocation5 + $0x10] sm:$0xff] %vm105, %v91
    %109 = vst.msk [vmem:[#allocation5 + $0x18] sm:$0xff] %vm105, %v92
    %110 = vst.msk [vmem:[#allocation5 + $0x20] sm:$0xff] %vm105, %v93
    %111 = vst.msk [vmem:[#allocation5 + $0x28] sm:$0xff] %vm105, %v94
    %112 = vst.msk [vmem:[#allocation5 + $0x30] sm:$0xff] %vm105, %v95
    %113 = vst.msk [vmem:[#allocation5 + $0x38] sm:$0xff] %vm105, %v96
    %114 = vst.msk [vmem:[#allocation5 + $0x40] sm:$0xff] %vm105, %v97
    %115 = vst.msk [vmem:[#allocation5 + $0x48] sm:$0xff] %vm105, %v98
    %116 = vst.msk [vmem:[#allocation5 + $0x50] sm:$0xff] %vm105, %v99
    %117 = vst.msk [vmem:[#allocation5 + $0x58] sm:$0xff] %vm105, %v100
    %118 = vst.msk [vmem:[#allocation5 + $0x60] sm:$0xff] %vm105, %v101
    %119 = vst.msk [vmem:[#allocation5 + $0x68] sm:$0xff] %vm105, %v102
    %120 = vst.msk [vmem:[#allocation5 + $0x70] sm:$0xff] %vm105, %v103
    %121 = vst.msk [vmem:[#allocation5 + $0x78] sm:$0xff] %vm105, %v104
    // Predicated region
    $region10: #{tpu_custom_call.1} parent=1 // pred_check
      _
    $region11: #{tpu_custom_call.1} parent=1 // pred_check_branch
      %123 = sbr.rel (0) target = $region13
    $region12: #{tpu_custom_call.1} parent=1 // pred_region
      %125 = vsyncadd [#allocation4], 0
      %s126 = sshll.u32 [#allocation5], 4
      %s127 = int_to_ptr.vmem [resolvable:$true] %s126
      %s128 = sshll.u32 %s1, 4
      %s129 = int_to_ptr.hbm [resolvable:$true] %s128
      %134 = dma.vmem_to_hbm [thread:$0]  %s127, 2048, %s129, [#allocation4], 128, 128, 8
    $region13: #{tpu_custom_call.1} parent=1 // pred_fallthru
      _
    // Predicated region
    $region14: #{tpu_custom_call.1} parent=1 // pred_check
      _
    $region15: #{tpu_custom_call.1} parent=1 // pred_check_branch
      %136 = sbr.rel (0) target = $region17
    $region16: #{tpu_custom_call.1} parent=1 // pred_region
      %138 = dma.done [#allocation4], 2048
    $region17: #{tpu_custom_call.1} parent=1 // pred_fallthru
      _
    %139 = vsyncpa [#allocation3], 1
    %140 = vsyncpa [#allocation4], 1

</llo_original>
